<compile_context>
chip_gen: v7x
topology: tpu7x:2x2x1
jax: 0.10.0
libtpu: 0.0.40
codegen_flags: <defaults>
</compile_context>

<pallas_src>
import functools
import math

import numpy as np
import jax
import jax.numpy as jnp
from jax import lax
from jax.experimental import pallas as pl
from jax.experimental.pallas import tpu as pltpu


def _id_loss_kernel(pred_ref, gidx_ref, out_ref, acc_ref, *, C, N):
    i = pl.program_id(0)

    @pl.when(i == 0)
    def _init():
        acc_ref[...] = jnp.zeros_like(acc_ref)

    x = pred_ref[...].astype(jnp.float32)        # (C, T) channels on sublanes, M on lanes
    g = gidx_ref[...]                            # (1, T) int32 group index; padding = -1
    T = x.shape[1]

    # Per-instance reductions over channels (tiny sublane reduce, C is small).
    rs = jnp.sum(x, axis=0, keepdims=True)       # (1, T)  sum_c x[c, m]
    rsq = jnp.sum(x * x, axis=0, keepdims=True)  # (1, T)  sum_c x[c, m]^2
    ones = jnp.ones((1, T), jnp.float32)         # row counter (padding masked by one-hot)
    stacked = jnp.concatenate([rs, rsq, ones], axis=0)   # (3, T)

    # In-kernel one-hot membership: oh[n, m] = (group(m) == n).  Padded lanes
    # carry -1 and therefore match no group.
    n_iota = lax.broadcasted_iota(jnp.int32, (N, T), 0)
    oh = (g == n_iota).astype(jnp.float32)       # (N, T)

    # Segmented reduction for this tile as a single MXU contraction over lanes:
    # (3, T) . (N, T)^T -> (3, N)  == [group_sum; group_sumsq; group_count].
    partial = lax.dot_general(stacked, oh, (((1,), (1,)), ((), ())),
                              preferred_element_type=jnp.float32)
    acc_ref[...] = acc_ref[...] + partial

    @pl.when(i == pl.num_programs(0) - 1)
    def _finalize():
        sum_row = acc_ref[0:1, :]    # (1, N) group sum over all elements
        sq_row = acc_ref[1:2, :]     # (1, N) group sum of squares
        cnt_row = acc_ref[2:3, :]    # (1, N) number of rows in each group

        n_el = cnt_row * float(C)                 # elements per group
        n_safe = jnp.maximum(n_el, 1.0)
        mean_row = sum_row / n_safe               # object_proto value (constant over C)
        var_row = (sq_row - sum_row * sum_row / n_safe) / jnp.maximum(n_el - 1.0, 1.0)
        std_row = jnp.where(cnt_row > 1.0,        # torch: std only if group has >1 rows
                            jnp.sqrt(jnp.maximum(var_row, 0.0)), 0.0)   # (1, N)

        # row -> column relayout with an eye mask + lane reduction (no transpose op).
        r_idx = lax.broadcasted_iota(jnp.int32, (N, N), 0)
        c_idx = lax.broadcasted_iota(jnp.int32, (N, N), 1)
        eye = (r_idx == c_idx).astype(jnp.float32)
        mean_col = jnp.sum(eye * mean_row, axis=1, keepdims=True)        # (N, 1)

        diff = mean_row - mean_col                 # diff[x, y] = m_y - m_x
        sqrt_c = math.sqrt(float(C))
        norm = sqrt_c * jnp.abs(diff)              # ||proto_y - proto_x||_2 (constant channels)
        absd = jnp.abs(diff) / (norm + 1e-5)       # |V_dist_detach| (channel independent)

        # V_iou.mean(dim=-1): unroll the broadcast (channel) axis of the reference.
        acc2 = jnp.zeros((N, N), jnp.float32)
        for z in range(N):                         # N is small & static
            std_z = std_row[0:1, z:z + 1]          # (1, 1)
            norm_z = norm[z:z + 1, :]              # (1, N): norm[z, y] == norm[y, z]
            num = (std_row + std_z) * absd         # (N, N): (s_y + s_z) * |d[x, y]|
            acc2 = acc2 + num / (norm_z + num + 1e-5)
        viou = acc2 / float(N)                     # (N, N)

        # V_iou[pos_ind[1], pos_ind[0]]  ==  strictly-lower-triangular entries.
        mask = r_idx > c_idx
        v = jnp.where(mask, viou, 0.0)
        # Guard against log(0) -> inf/NaN; the reference only has a runtime
        # NaN assert (no in-kernel equivalent), so we clamp just below 1.
        v = jnp.minimum(v, 1.0 - 1e-6)
        vals = -v * jnp.log(1.0 - v)               # masked entries contribute exactly 0
        npairs = float(N * (N - 1) // 2)
        out_ref[...] = jnp.sum(vals, keepdims=True) / npairs


def id_loss_pallas(pred_id, target_id, *, tile_lanes=1024):
    """Host glue + pallas_call.  target_id handling is data-dependent (not jittable)."""
    pred_id = jnp.asarray(pred_id, jnp.float32)
    tid = np.asarray(target_id)
    gt_id = np.unique(tid)                     # host-side equivalent of torch.unique (glue)
    num_gt = int(gt_id.shape[0])
    object_num = num_gt + 1
    M, C = pred_id.shape
    # Inherited from the reference's broadcasting: channel count must equal object_num.
    assert C == object_num, "reference broadcasting requires C == len(unique(target_id)) + 1"

    # Remap ids to dense group indices in [0, num_gt); padding lanes get -1.
    gidx = np.searchsorted(gt_id, tid).astype(np.int32)             # (M,)

    lane = 128
    tile = max(lane, min((int(tile_lanes) // lane) * lane,
                         ((M + lane - 1) // lane) * lane))
    m_pad = ((M + tile - 1) // tile) * tile
    grid = (m_pad // tile,)

    # Lane-dense layout: channels on sublanes, instances on lanes; zero-pad M.
    pred_t = jnp.zeros((C, m_pad), jnp.float32).at[:, :M].set(pred_id.T)
    g_row = np.full((1, m_pad), -1, np.int32)
    g_row[0, :M] = gidx
    g_row = jnp.asarray(g_row)

    # TODO(synk): for very large M on v7x, add a leading 2-wide "parallel" grid
    # axis to split M across the two TensorCores and combine partials in an epilogue.
    out = pl.pallas_call(
        functools.partial(_id_loss_kernel, C=C, N=object_num),
        out_shape=jax.ShapeDtypeStruct((1, 1), jnp.float32),
        grid_spec=pltpu.PrefetchScalarGridSpec(
            num_scalar_prefetch=0,
            grid=grid,
            in_specs=[
                pl.BlockSpec((C, tile), lambda i: (0, i)),
                pl.BlockSpec((1, tile), lambda i: (0, i)),
            ],
            out_specs=pl.BlockSpec((1, 1), lambda i: (0, 0)),
            scratch_shapes=[pltpu.VMEM((3, object_num), jnp.float32)],
        ),
        compiler_params=pltpu.CompilerParams(
            dimension_semantics=("arbitrary",)),
    )(pred_t, g_row)
    return out[0, 0]


def id_loss_reference(pred_id, target_id):
    """Pure NumPy transcription of IDLoss.forward (incl. its broadcasting)."""
    pred = np.asarray(pred_id, np.float64)
    tid = np.asarray(target_id)
    gt_id = np.unique(tid)
    G = len(gt_id)
    N = G + 1
    C = pred.shape[-1]
    proto = np.zeros((N, C))
    std = np.zeros((N, 1))
    for i in range(G):
        grp = pred[tid == gt_id[i]]
        proto[i] = grp.mean()
        std[i] = grp.std(ddof=1) if grp.shape[0] > 1 else 0.0
    proto = proto[:, None, :]                          # (N, 1, C)
    V_dist = np.transpose(proto, (1, 0, 2)) - proto    # (N, N, C)
    V_norm = np.abs(np.linalg.norm(V_dist, axis=2))    # (N, N)
    V_det = V_dist / (V_norm[..., None] + 1e-5)
    std_i = np.abs(np.tile(std, (1, N)) * V_det)       # same broadcast as torch (needs C == N)
    std_j = np.abs(np.tile(std.T, (N, 1)) * V_det)
    V_iou = (std_i + std_j) / (V_norm + std_i + std_j + 1e-5)
    Vm = V_iou.mean(axis=-1)
    r, c = np.triu_indices(N, k=1)
    v = Vm[c, r]
    v = -v * np.log(1.0 - v)
    return float(v.mean())


if __name__ == "__main__":
    key = jax.random.PRNGKey(0)
    M, C = 16, 4
    kp, kt = jax.random.split(key)
    pred_id = jax.random.normal(kp, (M, C), dtype=jnp.float32)
    # 3 distinct instance ids -> object_num = 4 == C (required by the reference).
    rand_ids = np.asarray(jax.random.randint(kt, (M - 3,), 0, 3), dtype=np.int32)
    target_id = np.concatenate([np.array([0, 1, 2], np.int32), rand_ids])

    loss = id_loss_pallas(pred_id, target_id)
    loss = jax.block_until_ready(loss)

    ref = id_loss_reference(np.asarray(pred_id), target_id)
    np.testing.assert_allclose(float(loss), ref, rtol=1e-3, atol=1e-5)
    print("KERNEL_OK")
</pallas_src>

<mosaic_0001>
module attributes {stable_mosaic.version = 11 : i64} {
  func.func @_id_loss_kernel(%arg0: i32, %arg1: memref<4x128xf32, #tpu.memory_space<vmem>>, %arg2: memref<1x128xi32, #tpu.memory_space<vmem>>, %arg3: memref<1x1xf32, #tpu.memory_space<vmem>>, %arg4: memref<3x4xf32, #tpu.memory_space<vmem>>) attributes {dimension_semantics = [#tpu.dimension_semantics<arbitrary>], iteration_bounds = array<i64: 1>, scalar_prefetch = 0 : i64, scratch_operands = 1 : i64, tpu.core_type = #tpu.core_type<tc>, window_params = [{transform_indices = @transform_0, window_bounds = array<i64: 4, 128>}, {transform_indices = @transform_1, window_bounds = array<i64: 1, 128>}, {pipeline_mode = #tpu.pipeline_mode<synchronous>, transform_indices = @transform_2, window_bounds = array<i64: 1, 1>}]} {
    %c0_i32 = arith.constant 0 : i32
    %0 = arith.cmpi eq, %arg0, %c0_i32 : i32
    %1 = arith.extui %0 : i1 to i32
    %c0_i32_0 = arith.constant 0 : i32
    %2 = arith.cmpi ne, %1, %c0_i32_0 : i32
    scf.if %2 {
      %cst_13 = arith.constant 0.000000e+00 : f32
      %24 = vector.broadcast %cst_13 : f32 to vector<3x4xf32>
      %c0_14 = arith.constant 0 : index
      %c0_15 = arith.constant 0 : index
      %25 = vector.load %arg4[%c0_14, %c0_15] : memref<3x4xf32, #tpu.memory_space<vmem>>, vector<3x4xf32>
      tpu.vector_store %arg4[%c0_14, %c0_15], %24 {strides = array<i32>} : memref<3x4xf32, #tpu.memory_space<vmem>>, vector<3x4xf32>,
    } else {
    }
    %c0 = arith.constant 0 : index
    %c0_1 = arith.constant 0 : index
    %3 = vector.load %arg1[%c0, %c0_1] : memref<4x128xf32, #tpu.memory_space<vmem>>, vector<4x128xf32>
    %c0_2 = arith.constant 0 : index
    %c0_3 = arith.constant 0 : index
    %4 = vector.load %arg2[%c0_2, %c0_3] : memref<1x128xi32, #tpu.memory_space<vmem>>, vector<1x128xi32>
    %cst = arith.constant dense<0.000000e+00> : vector<128xf32>
    %5 = vector.multi_reduction <add>, %3, %cst [0] : vector<4x128xf32> to vector<128xf32>
    %6 = vector.shape_cast %5 : vector<128xf32> to vector<1x128xf32>
    %7 = arith.mulf %3, %3 : vector<4x128xf32>
    %cst_4 = arith.constant dense<0.000000e+00> : vector<128xf32>
    %8 = vector.multi_reduction <add>, %7, %cst_4 [0] : vector<4x128xf32> to vector<128xf32>
    %9 = vector.shape_cast %8 : vector<128xf32> to vector<1x128xf32>
    %cst_5 = arith.constant 1.000000e+00 : f32
    %10 = vector.broadcast %cst_5 : f32 to vector<1x128xf32>
    %11 = tpu.concatenate %6, %9, %10 in 0 : vector<1x128xf32>, vector<1x128xf32>, vector<1x128xf32> -> vector<3x128xf32>
    %12 = tpu.iota {dimensions = array<i32: 0>} : vector<4x128xi32>
    %13 = vector.broadcast %4 : vector<1x128xi32> to vector<4x128xi32>
    %14 = arith.cmpi eq, %13, %12 : vector<4x128xi32>
    %15 = arith.extui %14 : vector<4x128xi1> to vector<4x128xi32>
    %16 = arith.sitofp %15 : vector<4x128xi32> to vector<4x128xf32>
    %cst_6 = arith.constant dense<0.000000e+00> : vector<3x4xf32>
    %17 = tpu.matmul %11, %16, %cst_6 {dimension_numbers = #tpu.dot_dimension_numbers<[1], [1], [0], [0], [0, 0, 1, 0], [], []>} : vector<3x128xf32>, vector<4x128xf32>, vector<3x4xf32> -> vector<3x4xf32>
    %c0_7 = arith.constant 0 : index
    %c0_8 = arith.constant 0 : index
    %18 = vector.load %arg4[%c0_7, %c0_8] : memref<3x4xf32, #tpu.memory_space<vmem>>, vector<3x4xf32>
    %19 = arith.addf %18, %17 : vector<3x4xf32>
    %c0_9 = arith.constant 0 : index
    %c0_10 = arith.constant 0 : index
    %20 = vector.load %arg4[%c0_9, %c0_10] : memref<3x4xf32, #tpu.memory_space<vmem>>, vector<3x4xf32>
    tpu.vector_store %arg4[%c0_9, %c0_10], %19 {strides = array<i32>} : memref<3x4xf32, #tpu.memory_space<vmem>>, vector<3x4xf32>,
    %c0_i32_11 = arith.constant 0 : i32
    %21 = arith.cmpi eq, %arg0, %c0_i32_11 : i32
    %22 = arith.extui %21 : i1 to i32
    %c0_i32_12 = arith.constant 0 : i32
    %23 = arith.cmpi ne, %22, %c0_i32_12 : i32
    scf.if %23 {
      %c0_13 = arith.constant 0 : index
      %c0_14 = arith.constant 0 : index
      %24 = vector.load %arg4[%c0_13, %c0_14] : memref<3x4xf32, #tpu.memory_space<vmem>>, vector<1x4xf32>
      %c1 = arith.constant 1 : index
      %c0_15 = arith.constant 0 : index
      %25 = vector.load %arg4[%c1, %c0_15] : memref<3x4xf32, #tpu.memory_space<vmem>>, vector<1x4xf32>
      %c2 = arith.constant 2 : index
      %c0_16 = arith.constant 0 : index
      %26 = vector.load %arg4[%c2, %c0_16] : memref<3x4xf32, #tpu.memory_space<vmem>>, vector<1x4xf32>
      %cst_17 = arith.constant 4.000000e+00 : f32
      %27 = vector.broadcast %cst_17 : f32 to vector<1x4xf32>
      %28 = arith.mulf %26, %27 : vector<1x4xf32>
      %cst_18 = arith.constant 1.000000e+00 : f32
      %29 = vector.broadcast %cst_18 : f32 to vector<1x4xf32>
      %30 = arith.maximumf %28, %29 : vector<1x4xf32>
      %31 = arith.divf %24, %30 : vector<1x4xf32>
      %32 = arith.mulf %24, %24 : vector<1x4xf32>
      %33 = arith.divf %32, %30 : vector<1x4xf32>
      %34 = arith.subf %25, %33 : vector<1x4xf32>
      %cst_19 = arith.constant 1.000000e+00 : f32
      %35 = vector.broadcast %cst_19 : f32 to vector<1x4xf32>
      %36 = arith.subf %28, %35 : vector<1x4xf32>
      %cst_20 = arith.constant 1.000000e+00 : f32
      %37 = vector.broadcast %cst_20 : f32 to vector<1x4xf32>
      %38 = arith.maximumf %36, %37 : vector<1x4xf32>
      %39 = arith.divf %34, %38 : vector<1x4xf32>
      %cst_21 = arith.constant 1.000000e+00 : f32
      %40 = vector.broadcast %cst_21 : f32 to vector<1x4xf32>
      %41 = arith.cmpf ogt, %26, %40 : vector<1x4xf32>
      %cst_22 = arith.constant 0.000000e+00 : f32
      %42 = vector.broadcast %cst_22 : f32 to vector<1x4xf32>
      %43 = arith.maximumf %39, %42 : vector<1x4xf32>
      %44 = math.sqrt %43 : vector<1x4xf32>
      %cst_23 = arith.constant 0.000000e+00 : f32
      %45 = vector.broadcast %cst_23 : f32 to vector<1x4xf32>
      %46 = arith.select %41, %44, %45 : vector<1x4xi1>, vector<1x4xf32>
      %47 = tpu.iota {dimensions = array<i32: 0>} : vector<4x4xi32>
      %48 = tpu.iota {dimensions = array<i32: 1>} : vector<4x4xi32>
      %49 = arith.cmpi eq, %47, %48 : vector<4x4xi32>
      %50 = arith.extui %49 : vector<4x4xi1> to vector<4x4xi32>
      %51 = arith.sitofp %50 : vector<4x4xi32> to vector<4x4xf32>
      %52 = vector.broadcast %31 : vector<1x4xf32> to vector<4x4xf32>
      %53 = arith.mulf %51, %52 : vector<4x4xf32>
      %cst_24 = arith.constant dense<0.000000e+00> : vector<4xf32>
      %54 = vector.multi_reduction <add>, %53, %cst_24 [1] : vector<4x4xf32> to vector<4xf32>
      %55 = vector.shape_cast %54 : vector<4xf32> to vector<4x1xf32>
      %56 = vector.broadcast %31 : vector<1x4xf32> to vector<4x4xf32>
      %57 = vector.broadcast %55 : vector<4x1xf32> to vector<4x4xf32>
      %58 = arith.subf %56, %57 : vector<4x4xf32>
      %59 = math.absf %58 : vector<4x4xf32>
      %cst_25 = arith.constant 2.000000e+00 : f32
      %60 = vector.broadcast %cst_25 : f32 to vector<4x4xf32>
      %61 = arith.mulf %60, %59 : vector<4x4xf32>
      %62 = math.absf %58 : vector<4x4xf32>
      %cst_26 = arith.constant 9.99999974E-6 : f32
      %63 = vector.broadcast %cst_26 : f32 to vector<4x4xf32>
      %64 = arith.addf %61, %63 : vector<4x4xf32>
      %65 = arith.divf %62, %64 : vector<4x4xf32>
      %cst_27 = arith.constant 0.000000e+00 : f32
      %66 = vector.broadcast %cst_27 : f32 to vector<4x4xf32>
      %67 = vector.extract_strided_slice %46 {offsets = [0, 0], sizes = [1, 1], strides = [1, 1]} : vector<1x4xf32> to vector<1x1xf32>
      %68 = vector.extract_strided_slice %61 {offsets = [0, 0], sizes = [1, 4], strides = [1, 1]} : vector<4x4xf32> to vector<1x4xf32>
      %69 = vector.broadcast %67 : vector<1x1xf32> to vector<1x4xf32>
      %70 = arith.addf %46, %69 : vector<1x4xf32>
      %71 = vector.broadcast %70 : vector<1x4xf32> to vector<4x4xf32>
      %72 = arith.mulf %71, %65 : vector<4x4xf32>
      %73 = vector.broadcast %68 : vector<1x4xf32> to vector<4x4xf32>
      %74 = arith.addf %73, %72 : vector<4x4xf32>
      %cst_28 = arith.constant 9.99999974E-6 : f32
      %75 = vector.broadcast %cst_28 : f32 to vector<4x4xf32>
      %76 = arith.addf %74, %75 : vector<4x4xf32>
      %77 = arith.divf %72, %76 : vector<4x4xf32>
      %78 = arith.addf %66, %77 : vector<4x4xf32>
      %79 = vector.extract_strided_slice %46 {offsets = [0, 1], sizes = [1, 1], strides = [1, 1]} : vector<1x4xf32> to vector<1x1xf32>
      %80 = vector.extract_strided_slice %61 {offsets = [1, 0], sizes = [1, 4], strides = [1, 1]} : vector<4x4xf32> to vector<1x4xf32>
      %81 = vector.broadcast %79 : vector<1x1xf32> to vector<1x4xf32>
      %82 = arith.addf %46, %81 : vector<1x4xf32>
      %83 = vector.broadcast %82 : vector<1x4xf32> to vector<4x4xf32>
      %84 = arith.mulf %83, %65 : vector<4x4xf32>
      %85 = vector.broadcast %80 : vector<1x4xf32> to vector<4x4xf32>
      %86 = arith.addf %85, %84 : vector<4x4xf32>
      %cst_29 = arith.constant 9.99999974E-6 : f32
      %87 = vector.broadcast %cst_29 : f32 to vector<4x4xf32>
      %88 = arith.addf %86, %87 : vector<4x4xf32>
      %89 = arith.divf %84, %88 : vector<4x4xf32>
      %90 = arith.addf %78, %89 : vector<4x4xf32>
      %91 = vector.extract_strided_slice %46 {offsets = [0, 2], sizes = [1, 1], strides = [1, 1]} : vector<1x4xf32> to vector<1x1xf32>
      %92 = vector.extract_strided_slice %61 {offsets = [2, 0], sizes = [1, 4], strides = [1, 1]} : vector<4x4xf32> to vector<1x4xf32>
      %93 = vector.broadcast %91 : vector<1x1xf32> to vector<1x4xf32>
      %94 = arith.addf %46, %93 : vector<1x4xf32>
      %95 = vector.broadcast %94 : vector<1x4xf32> to vector<4x4xf32>
      %96 = arith.mulf %95, %65 : vector<4x4xf32>
      %97 = vector.broadcast %92 : vector<1x4xf32> to vector<4x4xf32>
      %98 = arith.addf %97, %96 : vector<4x4xf32>
      %cst_30 = arith.constant 9.99999974E-6 : f32
      %99 = vector.broadcast %cst_30 : f32 to vector<4x4xf32>
      %100 = arith.addf %98, %99 : vector<4x4xf32>
      %101 = arith.divf %96, %100 : vector<4x4xf32>
      %102 = arith.addf %90, %101 : vector<4x4xf32>
      %103 = vector.extract_strided_slice %46 {offsets = [0, 3], sizes = [1, 1], strides = [1, 1]} : vector<1x4xf32> to vector<1x1xf32>
      %104 = vector.extract_strided_slice %61 {offsets = [3, 0], sizes = [1, 4], strides = [1, 1]} : vector<4x4xf32> to vector<1x4xf32>
      %105 = vector.broadcast %103 : vector<1x1xf32> to vector<1x4xf32>
      %106 = arith.addf %46, %105 : vector<1x4xf32>
      %107 = vector.broadcast %106 : vector<1x4xf32> to vector<4x4xf32>
      %108 = arith.mulf %107, %65 : vector<4x4xf32>
      %109 = vector.broadcast %104 : vector<1x4xf32> to vector<4x4xf32>
      %110 = arith.addf %109, %108 : vector<4x4xf32>
      %cst_31 = arith.constant 9.99999974E-6 : f32
      %111 = vector.broadcast %cst_31 : f32 to vector<4x4xf32>
      %112 = arith.addf %110, %111 : vector<4x4xf32>
      %113 = arith.divf %108, %112 : vector<4x4xf32>
      %114 = arith.addf %102, %113 : vector<4x4xf32>
      %cst_32 = arith.constant 4.000000e+00 : f32
      %115 = vector.broadcast %cst_32 : f32 to vector<4x4xf32>
      %116 = arith.divf %114, %115 : vector<4x4xf32>
      %117 = arith.cmpi sgt, %47, %48 : vector<4x4xi32>
      %cst_33 = arith.constant 0.000000e+00 : f32
      %118 = vector.broadcast %cst_33 : f32 to vector<4x4xf32>
      %119 = arith.select %117, %116, %118 : vector<4x4xi1>, vector<4x4xf32>
      %cst_34 = arith.constant 0.999998986 : f32
      %120 = vector.broadcast %cst_34 : f32 to vector<4x4xf32>
      %121 = arith.minimumf %119, %120 : vector<4x4xf32>
      %cst_35 = arith.constant 0.000000e+00 : f32
      %122 = vector.broadcast %cst_35 : f32 to vector<4x4xf32>
      %123 = arith.subf %122, %121 : vector<4x4xf32>
      %cst_36 = arith.constant 1.000000e+00 : f32
      %124 = vector.broadcast %cst_36 : f32 to vector<4x4xf32>
      %125 = arith.subf %124, %121 : vector<4x4xf32>
      %126 = math.log %125 : vector<4x4xf32>
      %127 = arith.mulf %123, %126 : vector<4x4xf32>
      %128 = vector.shape_cast %127 : vector<4x4xf32> to vector<1x4x4xf32>
      %cst_37 = arith.constant dense<0.000000e+00> : vector<1xf32>
      %129 = vector.multi_reduction <add>, %128, %cst_37 [1, 2] : vector<1x4x4xf32> to vector<1xf32>
      %130 = vector.shape_cast %129 : vector<1xf32> to vector<1x1x1xf32>
      %131 = vector.extract %130[0, 0, 0] : f32 from vector<1x1x1xf32>
      %132 = vector.broadcast %131 : f32 to vector<1x1xf32>
      %cst_38 = arith.constant 6.000000e+00 : f32
      %133 = vector.broadcast %cst_38 : f32 to vector<1x1xf32>
      %134 = arith.divf %132, %133 : vector<1x1xf32>
      %c0_39 = arith.constant 0 : index
      %c0_40 = arith.constant 0 : index
      %135 = vector.load %arg3[%c0_39, %c0_40] : memref<1x1xf32, #tpu.memory_space<vmem>>, vector<1x1xf32>
      tpu.vector_store %arg3[%c0_39, %c0_40], %134 {strides = array<i32>} : memref<1x1xf32, #tpu.memory_space<vmem>>, vector<1x1xf32>,
    } else {
    }
    return
  }
  func.func @transform_0(%arg0: i32) -> (i32, i32) {
    %c0_i32 = arith.constant 0 : i32
    %c0_i32_0 = arith.constant 0 : i32
    return %c0_i32, %arg0 : i32, i32
  }
  func.func @transform_1(%arg0: i32) -> (i32, i32) {
    %c0_i32 = arith.constant 0 : i32
    %c0_i32_0 = arith.constant 0 : i32
    return %c0_i32, %arg0 : i32, i32
  }
  func.func @transform_2(%arg0: i32) -> (i32, i32) {
    %c0_i32 = arith.constant 0 : i32
    %c0_i32_0 = arith.constant 0 : i32
    %c0_i32_1 = arith.constant 0 : i32
    return %c0_i32, %c0_i32_0 : i32, i32
  }
}

</mosaic_0001>

<llo_original>
// kernel: tpu_custom_call.1
$region0: #{tpu_custom_call.1}
  #allocation0 [shape = 'u32[]', space=smem, size = 0x4, offset = 0x4, fixed_abs, tag = 'smem constant byte address 0x4 - core index']
  #allocation1 [shape = 'u32[144,128]{1,0:T(1,128)}', space=vmem, size = 0x12000, scoped, tag = 'internal scratch']
  #allocation2 [shape = 'f32[3,4]{1,0:T(4,128)}', space=vmem, size = 0x800, scoped, tag = 'scratch operand']
  %s0 = inlined_call_operand.hbm [shape: f32[4,128], index: 0, kind: input, shape index: {}]
  %s1 = inlined_call_operand.vmem [shape: s32[1,128], index: 1, kind: input, shape index: {}]
  %s2 = inlined_call_operand.hbm [shape: f32[1,1], index: 2, kind: output, shape index: {}]
  %s3 = sld [smem:[#allocation0]]
  $region30: #{tpu_custom_call.1} parent=0
    _
  %s5 = ssub.s32 1, %s3
  %s6 = scalar_select 0, %s5, %s3
  $region1: #{tpu_custom_call.1} parent=0
    #allocation3 [shape = 'u8[2048]{0}', space=vmem, size = 0x800, scoped, tag = 'input window, operand 0, single buffered']
    #allocation4 [shape = 's32[1]{0}', space=sflag, size = 0x4, scoped, tag = 'scoped memory for tpu_custom_call.1']
    #allocation5 [shape = 's32[1]{0}', space=sflag, size = 0x4, scoped, tag = 'scoped memory for tpu_custom_call.1']
    #allocation6 [shape = 'u8[512]{0}', space=vmem, size = 0x400, scoped, tag = 'output window, operand 0, single buffered']
    %7 = vsyncpa [#allocation4], 0
    %8 = vsyncpa [#allocation5], 0
    // Predicated region
    $region2: #{tpu_custom_call.1} parent=1 // pred_check
      _
    $region3: #{tpu_custom_call.1} parent=1 // pred_check_branch
      %10 = sbr.rel (0) target = $region5
    $region4: #{tpu_custom_call.1} parent=1 // pred_region
      %s12 = ssub.s32 64, 64
      %13 = vsyncadd [#allocation4], %s12
      %s15 = sshll.u32 [#allocation3], 4
      %s16 = int_to_ptr.vmem [resolvable:$true] %s15
      %18 = dma.hbm_to_vmem [thread:$0]  %s0, 64, %s16, [#allocation4]
    $region5: #{tpu_custom_call.1} parent=1 // pred_fallthru
      _
    // Predicated region
    $region6: #{tpu_custom_call.1} parent=1 // pred_check
      _
    $region7: #{tpu_custom_call.1} parent=1 // pred_check_branch
      %20 = sbr.rel (0) target = $region9
    $region8: #{tpu_custom_call.1} parent=1 // pred_region
      _
    $region9: #{tpu_custom_call.1} parent=1 // pred_fallthru
      _
    // Predicated region
    $region10: #{tpu_custom_call.1} parent=1 // pred_check
      _
    $region11: #{tpu_custom_call.1} parent=1 // pred_check_branch
      %22 = sbr.rel (0) target = $region13
    $region12: #{tpu_custom_call.1} parent=1 // pred_region
      %23 = dma.done [#allocation4], 64
    $region13: #{tpu_custom_call.1} parent=1 // pred_fallthru
      _
    %p24 = scmp.eq.s32.totalorder 0, 0
    // Predicated region
    $region14: #{tpu_custom_call.1} parent=1 // pred_check
      %p25 = pneg %p24
    $region15: #{tpu_custom_call.1} parent=1 // pred_check_branch
      %27 = sbr.rel (%p25) target = $region17
    $region16: #{tpu_custom_call.1} parent=1 // pred_region
      %vm28 = vcmask 26624
      %29 = vst.msk [vmem:[#allocation2] sm:$0x7] %vm28, 0.0
    $region17: #{tpu_custom_call.1} parent=1 // pred_fallthru
      _
    %v30 = vld [vmem:[#allocation3] sm:$0xf]
    %v31 = vld [vmem:[%s1] sm:$0x1]
    %vm32 = vcmask 1043456
    %v33 = vsel %vm32, %v30, 0.0
    %v34 = vrot.slane %v33, 4
    %v35 = vadd.f32 %v33, %v34
    %v36 = vrot.slane %v35, 2
    %v37 = vadd.f32 %v35, %v36
    %v38 = vrot.slane %v37, 1
    %v39 = vadd.f32 %v37, %v38
    %v40 = vmul.f32 %v30, %v30
    %v41 = vsel %vm32, %v40, 0.0
    %v42 = vrot.slane %v41, 4
    %v43 = vadd.f32 %v41, %v42
    %v44 = vrot.slane %v43, 2
    %v45 = vadd.f32 %v43, %v44
    %v46 = vrot.slane %v45, 1
    %v47 = vadd.f32 %v45, %v46
    %vm48 = vcmask 1040384
    %v49 = vsel %vm48, %v39, %v47
    %vm50 = vcmask 1041408
    %v51 = vsel %vm50, %v49, 1.0
    %v52 = vlaneseq
    %v53 = vshrl.u32 %v52, 7
    %v54 = vlaneseq
    %v55 = vshrl.u32 %v54, 7
    %v56 = vsub.s32 0, %v55
    %v57 = vrot.slane %v31, %v56
    %vm58 = vcmp.eq.s32.totalorder %v57, %v53
    %v59 = vsel %vm58, 1, 0
    %v60 = vcvt.s32.f32 %v59
    %61 = vmatprep.subr.mxu0 0.0
    %62 = vmatpush1.xpose.msra.mxu0 %v60
    %63 = vmatprep.subr.mxu0 0.0
    %64 = vmatpush1.xpose.msra.mxu0 0.0
    %65 = vmatprep.subr.mxu0 0.0
    %66 = vmatpush1.xpose.msra.mxu0 0.0
    %67 = vmatprep.subr.mxu0 0.0
    %68 = vmatpush1.xpose.msra.mxu0 0.0
    %69 = vmatprep.subr.mxu0 0.0
    %70 = vmatpush1.xpose.msra.mxu0 0.0
    %71 = vmatprep.subr.mxu0 0.0
    %72 = vmatpush1.xpose.msra.mxu0 0.0
    %73 = vmatprep.subr.mxu0 0.0
    %74 = vmatpush1.xpose.msra.mxu0 0.0
    %75 = vmatprep.subr.mxu0 0.0
    %76 = vmatpush1.xpose.msra.mxu0 0.0
    %77 = vmatprep.subr.mxu0 0.0
    %78 = vmatpush1.xpose.msra.mxu0 0.0
    %79 = vmatprep.subr.mxu0 0.0
    %80 = vmatpush1.xpose.msra.mxu0 0.0
    %81 = vmatprep.subr.mxu0 0.0
    %82 = vmatpush1.xpose.msra.mxu0 0.0
    %83 = vmatprep.subr.mxu0 0.0
    %84 = vmatpush1.xpose.msra.mxu0 0.0
    %85 = vmatprep.subr.mxu0 0.0
    %86 = vmatpush1.xpose.msra.mxu0 0.0
    %87 = vmatprep.subr.mxu0 0.0
    %88 = vmatpush1.xpose.msra.mxu0 0.0
    %89 = vmatprep.subr.mxu0 0.0
    %90 = vmatpush1.xpose.msra.mxu0 0.0
    %91 = vmatprep.subr.mxu0 0.0
    %92 = vmatpush1.xpose.msra.mxu0 0.0
    %93 = vmatprep.subr.mxu0 0.0
    %94 = vmatpush1.xpose.msra.mxu0 0.0
    %95 = vmatprep.subr.mxu0 0.0
    %96 = vmatpush1.xpose.msra.mxu0 0.0
    %97 = vmatprep.subr.mxu0 0.0
    %98 = vmatpush1.xpose.msra.mxu0 0.0
    %99 = vmatprep.subr.mxu0 0.0
    %100 = vmatpush1.xpose.msra.mxu0 0.0
    %101 = vmatprep.subr.mxu0 0.0
    %102 = vmatpush1.xpose.msra.mxu0 0.0
    %103 = vmatprep.subr.mxu0 0.0
    %104 = vmatpush1.xpose.msra.mxu0 0.0
    %105 = vmatprep.subr.mxu0 0.0
    %106 = vmatpush1.xpose.msra.mxu0 0.0
    %107 = vmatprep.subr.mxu0 0.0
    %108 = vmatpush1.xpose.msra.mxu0 0.0
    %109 = vmatprep.subr.mxu0 0.0
    %110 = vmatpush1.xpose.msra.mxu0 0.0
    %111 = vmatprep.subr.mxu0 0.0
    %112 = vmatpush1.xpose.msra.mxu0 0.0
    %113 = vmatprep.subr.mxu0 0.0
    %114 = vmatpush1.xpose.msra.mxu0 0.0
    %115 = vmatprep.subr.mxu0 0.0
    %116 = vmatpush1.xpose.msra.mxu0 0.0
    %117 = vmatprep.subr.mxu0 0.0
    %118 = vmatpush1.xpose.msra.mxu0 0.0
    %119 = vmatprep.subr.mxu0 0.0
    %120 = vmatpush1.xpose.msra.mxu0 0.0
    %121 = vmatprep.subr.mxu0 0.0
    %122 = vmatpush1.xpose.msra.mxu0 0.0
    %123 = vmatprep.subr.mxu0 0.0
    %124 = vmatpush1.xpose.msra.mxu0 0.0
    %125 = vmatprep.mubr.f32.mxu0 0.0
    %126 = vmatmul.mubr.f32.gmra.mrb[0].mxu0 %v51
    %v127 = vpop.f32.mrb[0].mxu0
    %v128 = vadd.f32 0.0, %v127
    %v129 = vpop.f32.mrb[0].mxu0
    %130 = vdwg.mxu0
    %v131 = vld [vmem:[#allocation2] sm:$0x7]
    %v132 = vadd.f32 %v131, %v128
    %vm133 = vcmask 26624
    %134 = vst.msk [vmem:[#allocation2] sm:$0x7] %vm133, %v132
    // Predicated region
    $region18: #{tpu_custom_call.1} parent=1 // pred_check
      %p135 = pneg %p24
    $region19: #{tpu_custom_call.1} parent=1 // pred_check_branch
      %137 = sbr.rel (%p135) target = $region21
    $region20: #{tpu_custom_call.1} parent=1 // pred_region
      %v138 = vld [vmem:[#allocation2] sm:$0x1]
      %v139 = vld [vmem:[#allocation2 + $0x1] sm:$0x1]
      %v140 = vld [vmem:[#allocation2 + $0x2] sm:$0x1]
      %v141 = vmul.f32 %v140, 4.0
      %v142 = vmax.f32 %v141, 1.0
      %v143 = vrcp.pop %v142
      %v144 = vmul.f32 %v138, %v143
      %v145 = vmul.f32 %v138, %v138
      %v146 = vmul.f32 %v145, %v143
      %v147 = vsub.f32 %v139, %v146
      %v148 = vsub.f32 %v141, 1.0
      %v149 = vmax.f32 %v148, 1.0
      %v150 = vrcp.pop %v149
      %v151 = vmul.f32 %v147, %v150
      %vm152 = vcmp.gt.f32.partialorder %v140, 1.0
      %v153 = vmax.f32 %v151, 0.0
      %v154 = vrsqrt.pop %v153
      %v155 = vmul.f32 %v153, %v154
      %vm156 = vcmp.eq.f32.partialorder %v153, inf
      %v157 = vsel %vm156, %v153, %v155
      %vm158 = vcmp.eq.f32.partialorder %v153, 0.0
      %v159 = vand.u32 %v153, 2147483648
      %v160 = vsel %vm158, %v159, %v157
      %v161 = vsel %vm152, %v160, 0.0
      %v162 = vlaneseq
      %v163 = vand.u32 %v162, 127
      %vm164 = vcmp.eq.s32.totalorder %v53, %v163
      %v165 = vsel %vm164, 1, 0
      %v166 = vcvt.s32.f32 %v165
      %v167 = vlaneseq
      %v168 = vshrl.u32 %v167, 7
      %v169 = vsub.s32 0, %v168
      %v170 = vrot.slane %v144, %v169
      %v171 = vmul.f32 %v166, %v170
      %vm172 = vcmask 27648
      %v173 = vsel %vm172, %v171, 0.0
      %174 = vadd.xlane.f32.xlu0 %v173
      %v175 = vpop.xlane.xlu0 %174
      %v176 = vsub.f32 %v170, %v175
      %v177 = vand.u32 2147483647, %v176
      %v178 = vmul.f32 %v177, 2.0
      %v179 = vadd.f32 %v178, 1e-05
      %v180 = vrcp.pop %v179
      %v181 = vmul.f32 %v177, %v180
      %183 = vset.pattern.permute.xlu0 0
      %184 = vperm.xlu0 %183, %v161
      %v185 = vpop.permute.xlu0 %184
      %v187 = vadd.f32 %v161, %v185
      %v188 = vlaneseq
      %v189 = vshrl.u32 %v188, 7
      %v190 = vsub.s32 0, %v189
      %v191 = vrot.slane %v187, %v190
      %v192 = vmul.f32 %v191, %v181
      %v193 = vlaneseq
      %v194 = vshrl.u32 %v193, 7
      %v195 = vsub.s32 0, %v194
      %v196 = vrot.slane %v178, %v195
      %v197 = vadd.f32 %v196, %v192
      %v198 = vadd.f32 %v197, 1e-05
      %v199 = vrcp.pop %v198
      %v200 = vmul.f32 %v192, %v199
      %v201 = vadd.f32 %v200, 0.0
      %202 = vset.pattern.permute.xlu0 1
      %203 = vperm.xlu0 %202, %v161
      %v204 = vpop.permute.xlu0 %203
      %v206 = vadd.f32 %v161, %v204
      %v207 = vlaneseq
      %v208 = vshrl.u32 %v207, 7
      %v209 = vsub.s32 0, %v208
      %v210 = vrot.slane %v206, %v209
      %v211 = vmul.f32 %v210, %v181
      %v212 = vlaneseq
      %v213 = vshrl.u32 %v212, 7
      %v214 = vsub.s32 1, %v213
      %v215 = vrot.slane %v178, %v214
      %v216 = vadd.f32 %v215, %v211
      %v217 = vadd.f32 %v216, 1e-05
      %v218 = vrcp.pop %v217
      %v219 = vmul.f32 %v211, %v218
      %v220 = vadd.f32 %v201, %v219
      %221 = vset.pattern.permute.xlu0 2
      %222 = vperm.xlu0 %221, %v161
      %v223 = vpop.permute.xlu0 %222
      %v225 = vadd.f32 %v161, %v223
      %v226 = vlaneseq
      %v227 = vshrl.u32 %v226, 7
      %v228 = vsub.s32 0, %v227
      %v229 = vrot.slane %v225, %v228
      %v230 = vmul.f32 %v229, %v181
      %v231 = vlaneseq
      %v232 = vshrl.u32 %v231, 7
      %v233 = vsub.s32 2, %v232
      %v234 = vrot.slane %v178, %v233
      %v235 = vadd.f32 %v234, %v230
      %v236 = vadd.f32 %v235, 1e-05
      %v237 = vrcp.pop %v236
      %v238 = vmul.f32 %v230, %v237
      %v239 = vadd.f32 %v220, %v238
      %240 = vset.pattern.permute.xlu0 3
      %241 = vperm.xlu0 %240, %v161
      %v242 = vpop.permute.xlu0 %241
      %v244 = vadd.f32 %v161, %v242
      %v245 = vlaneseq
      %v246 = vshrl.u32 %v245, 7
      %v247 = vsub.s32 0, %v246
      %v248 = vrot.slane %v244, %v247
      %v249 = vmul.f32 %v248, %v181
      %v250 = vlaneseq
      %v251 = vshrl.u32 %v250, 7
      %v252 = vsub.s32 3, %v251
      %v253 = vrot.slane %v178, %v252
      %v254 = vadd.f32 %v253, %v249
      %v255 = vadd.f32 %v254, 1e-05
      %v256 = vrcp.pop %v255
      %v257 = vmul.f32 %v249, %v256
      %v258 = vadd.f32 %v239, %v257
      %v259 = vrcp.pop 4.0
      %v260 = vmul.f32 %v258, %v259
      %vm261 = vcmp.gt.s32.totalorder %v53, %v163
      %v262 = vsel %vm261, %v260, 0.0
      %v263 = vmin.f32 %v262, 0.999999
      %v264 = vsub.f32 0.0, %v263
      %v265 = vsub.f32 1.0, %v263
      %v266 = vlog2.pop %v265
      %v267 = vmul.f32 %v266, 0.6931472
      %v268 = vmul.f32 %v264, %v267
      %v269 = vsel %vm172, %v268, 0.0
      %270 = vadd.xlane.f32.xlu0 %v269
      %v271 = vpop.xlane.xlu0 %270
      %v272 = vrot.slane %v271, 4
      %v273 = vadd.f32 %v271, %v272
      %v274 = vrot.slane %v273, 2
      %v275 = vadd.f32 %v273, %v274
      %v276 = vrot.slane %v275, 1
      %v277 = vadd.f32 %v275, %v276
      %s278 = vtos %v277
      %v279 = vstv %s278
      %v280 = vrcp.pop 6.0
      %v281 = vmul.f32 %v279, %v280
      %vm282 = vcmask 0
      %283 = vst.msk [vmem:[#allocation6] sm:$0x1] %vm282, %v281
    $region21: #{tpu_custom_call.1} parent=1 // pred_fallthru
      _
    // Predicated region
    $region22: #{tpu_custom_call.1} parent=1 // pred_check
      _
    $region23: #{tpu_custom_call.1} parent=1 // pred_check_branch
      %285 = sbr.rel (0) target = $region25
    $region24: #{tpu_custom_call.1} parent=1 // pred_region
      %s287 = ssub.s32 16, 16
      %288 = vsyncadd [#allocation5], %s287
      %s290 = sshll.u32 [#allocation6], 4
      %s291 = int_to_ptr.vmem [resolvable:$true] %s290
      %293 = dma.vmem_to_hbm [thread:$0]  %s291, 16, %s2, [#allocation5]
    $region25: #{tpu_custom_call.1} parent=1 // pred_fallthru
      _
    // Predicated region
    $region26: #{tpu_custom_call.1} parent=1 // pred_check
      _
    $region27: #{tpu_custom_call.1} parent=1 // pred_check_branch
      %295 = sbr.rel (0) target = $region29
    $region28: #{tpu_custom_call.1} parent=1 // pred_region
      %296 = dma.done [#allocation5], 16
    $region29: #{tpu_custom_call.1} parent=1 // pred_fallthru
      _
    %297 = vsyncpa [#allocation4], 1
    %298 = vsyncpa [#allocation5], 1

</llo_original>
